<compile_context>
chip_gen: v7x
topology: tpu7x:2x2x1
jax: 0.10.0
libtpu: 0.0.40
codegen_flags: <defaults>
</compile_context>

<pallas_src>
import math
import random as pyrandom

import jax
import jax.numpy as jnp
from jax.experimental import pallas as pl
from jax.experimental.pallas import tpu as pltpu


# ---------------------------------------------------------------------------
# Hardware-aware sizing
# ---------------------------------------------------------------------------
def _vmem_capacity_bytes():
    try:
        return int(pltpu.get_tpu_info().vmem_capacity_bytes)
    except Exception:
        return 64 << 20                        # conservative (v7x per-TC VMEM)


_VMEM_CAP = _vmem_capacity_bytes()
# Scoped-VMEM limit handed to Mosaic; conservative cross-generation cap.
_VMEM_LIMIT = max(32 << 20, min(int(0.75 * _VMEM_CAP), 48 << 20))

# Reduction tiling: one grid step consumes an (8, _RED_W) f32 slab (= 2 MiB).
_RED_W = 64 * 1024
_RED_SLAB = 8 * _RED_W

# Mix tiling: target ~2 MiB per (C, tile) block.
_MIX_TILE_BYTES = 2 << 20


# ---------------------------------------------------------------------------
# Kernel 1 (fused path): norms + scale + mix in a single pass over VMEM-resident data.
# ---------------------------------------------------------------------------
def _fused_kernel(snr_ref, audio_ref, noise_ref, out_ref):
    a = audio_ref[...].astype(jnp.float32)               # (C, L)
    n = noise_ref[...].astype(jnp.float32)               # (1, L)
    a_ss = jnp.sum(a * a, keepdims=True)                 # (1, 1)
    n_ss = jnp.sum(n * n, keepdims=True)                 # (1, 1)
    scale = snr_ref[0, 0] * jnp.sqrt(n_ss / a_ss)        # (1, 1)
    out_ref[...] = (scale * a + n) * 0.5                 # noise broadcast over channels


def _fused_forward(snr, audio, noise):
    C, L = audio.shape
    snr_arr = jnp.asarray(snr, jnp.float32).reshape(1, 1)
    return pl.pallas_call(
        _fused_kernel,
        out_shape=jax.ShapeDtypeStruct((C, L), jnp.float32),
        grid=(1,),
        in_specs=[
            pl.BlockSpec(memory_space=pltpu.MemorySpace.SMEM),   # snr scalar
            pl.BlockSpec((C, L), lambda i: (0, 0)),
            pl.BlockSpec((1, L), lambda i: (0, 0)),
        ],
        out_specs=pl.BlockSpec((C, L), lambda i: (0, 0)),
        compiler_params=pltpu.CompilerParams(
            dimension_semantics=("arbitrary",),
            vmem_limit_bytes=_VMEM_LIMIT),
    )(snr_arr, audio, noise)


# ---------------------------------------------------------------------------
# Kernel 2 (two-pass path): sum-of-squares with a VMEM vector accumulator.
# ---------------------------------------------------------------------------
def _sumsq_kernel(x_ref, out_ref, acc_ref):
    @pl.when(pl.program_id(0) == 0)
    def _init():
        acc_ref[...] = jnp.zeros_like(acc_ref)

    x = x_ref[...].astype(jnp.float32)
    acc_ref[...] += x * x                                 # pure VPU mul-add per step

    @pl.when(pl.program_id(0) == pl.num_programs(0) - 1)
    def _finalize():
        out_ref[...] = jnp.sum(acc_ref[...], keepdims=True)   # single XLU reduce at end


def _sum_sq(x):
    """Sum of squares over all elements of x (f32 accumulation)."""
    flat = x.reshape(-1).astype(jnp.float32)
    n = flat.shape[0]
    n_slabs = n // _RED_SLAB
    tail = flat[n_slabs * _RED_SLAB:]
    tail_ss = jnp.sum(tail * tail) if tail.shape[0] else jnp.float32(0.0)
    if n_slabs == 0:                                      # tiny input: plain XLA
        return tail_ss
    main = flat[: n_slabs * _RED_SLAB].reshape(n_slabs * 8, _RED_W)  # sublane/lane dense
    partial = pl.pallas_call(
        _sumsq_kernel,
        out_shape=jax.ShapeDtypeStruct((1, 1), jnp.float32),
        grid=(n_slabs,),
        in_specs=[pl.BlockSpec((8, _RED_W), lambda i: (i, 0))],
        out_specs=pl.BlockSpec((1, 1), lambda i: (0, 0)),
        scratch_shapes=[pltpu.VMEM((8, _RED_W), jnp.float32)],
        compiler_params=pltpu.CompilerParams(
            dimension_semantics=("arbitrary",),
            vmem_limit_bytes=_VMEM_LIMIT),
    )(main)
    return partial[0, 0] + tail_ss


# ---------------------------------------------------------------------------
# Kernel 3 (two-pass path): out = (scale * audio + noise) / 2
# ---------------------------------------------------------------------------
def _mix_kernel(scale_ref, audio_ref, noise_ref, out_ref):
    out_ref[...] = (scale_ref[0, 0] * audio_ref[...] + noise_ref[...]) * 0.5


def _pick_mix_tile(C, L):
    if C * L * 4 <= 2 * _MIX_TILE_BYTES:
        return L                                          # single full-array block
    t = (_MIX_TILE_BYTES // (4 * C)) // 128 * 128
    return min(max(t, 128), L)


def _mix(scale, audio, noise):
    C, L = audio.shape
    tile = _pick_mix_tile(C, L)
    grid = pl.cdiv(L, tile)                               # ragged last tile OK
    scale_arr = jnp.asarray(scale, jnp.float32).reshape(1, 1)
    return pl.pallas_call(
        _mix_kernel,
        out_shape=jax.ShapeDtypeStruct((C, L), jnp.float32),
        grid=(grid,),
        in_specs=[
            pl.BlockSpec(memory_space=pltpu.MemorySpace.SMEM),   # scale scalar
            pl.BlockSpec((C, tile), lambda i: (0, i)),
            pl.BlockSpec((1, tile), lambda i: (0, i)),
        ],
        out_specs=pl.BlockSpec((C, tile), lambda i: (0, i)),
        compiler_params=pltpu.CompilerParams(
            dimension_semantics=("parallel",),
            vmem_limit_bytes=_VMEM_LIMIT),
    )(scale_arr, audio, noise)


# ---------------------------------------------------------------------------
# Module-equivalent forward (glue + kernels)
# ---------------------------------------------------------------------------
def random_background_noise(audio_data, noise_full, *, min_snr_db=0, max_snr_db=15,
                            seed=0, force_two_pass=False):
    rng = pyrandom.Random(seed)            # stands in for the module's `random`
    audio_data = jnp.asarray(audio_data, jnp.float32)
    noise_full = jnp.asarray(noise_full, jnp.float32)

    audio_length = audio_data.shape[-1]
    noise_length = noise_full.shape[-1]
    if noise_length > audio_length:
        offset = rng.randint(0, noise_length - audio_length)
        noise = jax.lax.dynamic_slice_in_dim(noise_full, offset, audio_length, axis=-1)
    elif noise_length < audio_length:
        pad = jnp.zeros((noise_full.shape[0], audio_length - noise_length), jnp.float32)
        noise = jnp.concatenate([noise_full, pad], axis=-1)
    else:
        noise = noise_full

    snr_db = rng.randint(min_snr_db, max_snr_db)
    snr = math.exp(snr_db / 10)            # matches torch module (math.exp, not 10**x)

    C, L = audio_data.shape
    resident_bytes = 4 * (2 * C * L + L)   # audio + out + noise, f32, if kept in VMEM
    use_fused = (not force_two_pass) and (2 * resident_bytes + (8 << 20) <= _VMEM_LIMIT)

    if use_fused:
        out = _fused_forward(snr, audio_data, noise)
    else:
        a_ss = _sum_sq(audio_data)
        n_ss = _sum_sq(noise)
        # NOTE: silent audio (||audio|| == 0) yields inf/NaN scale, same as torch module.
        scale = snr * jnp.sqrt(n_ss / a_ss)
        out = _mix(scale, audio_data, noise)
    return out, noise, snr


def _reference(audio, noise, snr):
    # Independent pure-JAX reference (non-circular: norms via jnp.linalg.norm).
    scale = snr * jnp.linalg.norm(noise) / jnp.linalg.norm(audio)
    return (scale * audio + noise) / 2.0


if __name__ == "__main__":
    key = jax.random.PRNGKey(0)
    k1, k2, k3, k4 = jax.random.split(key, 4)

    # Case 1: small input -> fused single-pass kernel; noise longer than audio (crop path).
    C1, L1, NL1 = 2, 4096, 5000
    audio1 = jax.random.normal(k1, (C1, L1), dtype=jnp.float32)
    noise1 = 0.3 * jax.random.normal(k2, (1, NL1), dtype=jnp.float32)
    out1, used1, snr1 = random_background_noise(audio1, noise1, seed=0)
    out1 = jax.block_until_ready(out1)
    ref1 = _reference(audio1, used1, snr1)
    assert out1.shape == (C1, L1) and out1.dtype == jnp.float32
    assert jnp.allclose(out1, ref1, rtol=1e-4, atol=1e-5), "fused path mismatch"

    # Case 2: forces the large-input two-pass path (tiled L2 reduce with vector
    # accumulator + tiled mix, including ragged last tiles); noise shorter (pad path).
    C2, L2, NL2 = 2, 700_001, 600_000
    audio2 = jax.random.normal(k3, (C2, L2), dtype=jnp.float32)
    noise2 = 0.1 * jax.random.normal(k4, (1, NL2), dtype=jnp.float32)
    out2, used2, snr2 = random_background_noise(audio2, noise2, seed=1,
                                                force_two_pass=True)
    out2 = jax.block_until_ready(out2)
    ref2 = _reference(audio2, used2, snr2)
    assert out2.shape == (C2, L2) and out2.dtype == jnp.float32
    assert jnp.allclose(out2, ref2, rtol=1e-4, atol=1e-5), "two-pass path mismatch"

    print("KERNEL_OK")
</pallas_src>

<mosaic_0001>
module attributes {stable_mosaic.version = 11 : i64} {
  func.func @_fused_kernel(%arg0: i32, %arg1: memref<1x1xf32, #tpu.memory_space<smem>>, %arg2: memref<2x4096xf32, #tpu.memory_space<vmem>>, %arg3: memref<1x4096xf32, #tpu.memory_space<vmem>>, %arg4: memref<2x4096xf32, #tpu.memory_space<vmem>>) attributes {dimension_semantics = [#tpu.dimension_semantics<arbitrary>], iteration_bounds = array<i64: 1>, scalar_prefetch = 0 : i64, scratch_operands = 0 : i64, tpu.core_type = #tpu.core_type<tc>, window_params = [{transform_indices = @transform_0, window_bounds = array<i64: 1, 1>}, {pipeline_mode = #tpu.pipeline_mode<synchronous>, transform_indices = @transform_1, window_bounds = array<i64: 2, 4096>}, {pipeline_mode = #tpu.pipeline_mode<synchronous>, transform_indices = @transform_2, window_bounds = array<i64: 1, 4096>}, {pipeline_mode = #tpu.pipeline_mode<synchronous>, transform_indices = @transform_3, window_bounds = array<i64: 2, 4096>}]} {
    %c0 = arith.constant 0 : index
    %c0_0 = arith.constant 0 : index
    %0 = vector.load %arg2[%c0, %c0_0] : memref<2x4096xf32, #tpu.memory_space<vmem>>, vector<2x4096xf32>
    %c0_1 = arith.constant 0 : index
    %c0_2 = arith.constant 0 : index
    %1 = vector.load %arg3[%c0_1, %c0_2] : memref<1x4096xf32, #tpu.memory_space<vmem>>, vector<1x4096xf32>
    %2 = arith.mulf %0, %0 : vector<2x4096xf32>
    %3 = vector.shape_cast %2 : vector<2x4096xf32> to vector<1x2x4096xf32>
    %cst = arith.constant dense<0.000000e+00> : vector<1xf32>
    %4 = vector.multi_reduction <add>, %3, %cst [1, 2] : vector<1x2x4096xf32> to vector<1xf32>
    %5 = vector.shape_cast %4 : vector<1xf32> to vector<1x1x1xf32>
    %6 = vector.extract %5[0, 0, 0] : f32 from vector<1x1x1xf32>
    %7 = vector.broadcast %6 : f32 to vector<1x1xf32>
    %8 = arith.mulf %1, %1 : vector<1x4096xf32>
    %9 = vector.shape_cast %8 : vector<1x4096xf32> to vector<1x1x4096xf32>
    %cst_3 = arith.constant dense<0.000000e+00> : vector<1xf32>
    %10 = vector.multi_reduction <add>, %9, %cst_3 [1, 2] : vector<1x1x4096xf32> to vector<1xf32>
    %11 = vector.shape_cast %10 : vector<1xf32> to vector<1x1x1xf32>
    %12 = vector.extract %11[0, 0, 0] : f32 from vector<1x1x1xf32>
    %13 = vector.broadcast %12 : f32 to vector<1x1xf32>
    %c0_4 = arith.constant 0 : index
    %c0_5 = arith.constant 0 : index
    %14 = memref.load %arg1[%c0_4, %c0_5] : memref<1x1xf32, #tpu.memory_space<smem>>
    %15 = arith.divf %13, %7 : vector<1x1xf32>
    %16 = math.sqrt %15 : vector<1x1xf32>
    %17 = vector.broadcast %14 : f32 to vector<1x1xf32>
    %18 = arith.mulf %17, %16 : vector<1x1xf32>
    %19 = vector.broadcast %18 : vector<1x1xf32> to vector<2x4096xf32>
    %20 = arith.mulf %19, %0 : vector<2x4096xf32>
    %21 = vector.broadcast %1 : vector<1x4096xf32> to vector<2x4096xf32>
    %22 = arith.addf %20, %21 : vector<2x4096xf32>
    %cst_6 = arith.constant 5.000000e-01 : f32
    %23 = vector.broadcast %cst_6 : f32 to vector<2x4096xf32>
    %24 = arith.mulf %22, %23 : vector<2x4096xf32>
    %c0_7 = arith.constant 0 : index
    %c0_8 = arith.constant 0 : index
    %25 = vector.load %arg4[%c0_7, %c0_8] : memref<2x4096xf32, #tpu.memory_space<vmem>>, vector<2x4096xf32>
    tpu.vector_store %arg4[%c0_7, %c0_8], %24 {strides = array<i32>} : memref<2x4096xf32, #tpu.memory_space<vmem>>, vector<2x4096xf32>,
    return
  }
  func.func @transform_0(%arg0: i32) -> (i32, i32) {
    %c0_i32 = arith.constant 0 : i32
    %c0_i32_0 = arith.constant 0 : i32
    %c0_i32_1 = arith.constant 0 : i32
    return %c0_i32, %c0_i32_0 : i32, i32
  }
  func.func @transform_1(%arg0: i32) -> (i32, i32) {
    %c0_i32 = arith.constant 0 : i32
    %c0_i32_0 = arith.constant 0 : i32
    %c0_i32_1 = arith.constant 0 : i32
    return %c0_i32, %c0_i32_0 : i32, i32
  }
  func.func @transform_2(%arg0: i32) -> (i32, i32) {
    %c0_i32 = arith.constant 0 : i32
    %c0_i32_0 = arith.constant 0 : i32
    %c0_i32_1 = arith.constant 0 : i32
    return %c0_i32, %c0_i32_0 : i32, i32
  }
  func.func @transform_3(%arg0: i32) -> (i32, i32) {
    %c0_i32 = arith.constant 0 : i32
    %c0_i32_0 = arith.constant 0 : i32
    %c0_i32_1 = arith.constant 0 : i32
    return %c0_i32, %c0_i32_0 : i32, i32
  }
}

</mosaic_0001>

<llo_original>
// kernel: tpu_custom_call.1
$region0: #{tpu_custom_call.1}
  #allocation0 [shape = 'u32[]', space=smem, size = 0x4, offset = 0x4, fixed_abs, tag = 'smem constant byte address 0x4 - core index']
  #allocation1 [shape = 'u32[144,128]{1,0:T(1,128)}', space=vmem, size = 0x12000, scoped, tag = 'internal scratch']
  #allocation2 [shape = 'f32[1,1]{1,0:T(1,128)S(6)}', space=smem, size = 0x200, scoped, tag = 'scoped memory for tpu_custom_call.1']
  %s0 = inlined_call_operand.<no memory space> [shape: f32[1,1], index: 0, kind: input, shape index: {}]
  %s1 = inlined_call_operand.hbm [shape: f32[2,4096], index: 1, kind: input, shape index: {}]
  %s2 = inlined_call_operand.hbm [shape: f32[1,4096], index: 2, kind: input, shape index: {}]
  %s3 = inlined_call_operand.hbm [shape: f32[2,4096], index: 3, kind: output, shape index: {}]
  %s4 = sld [smem:[#allocation0]]
  $region30: #{tpu_custom_call.1} parent=0
    _
  %s6 = ssub.s32 1, %s4
  %s7 = scalar_select 0, %s6, %s4
  %8 = sst [smem:[#allocation2]] %s0
  $region1: #{tpu_custom_call.1} parent=0
    #allocation3 [shape = 'u8[32768]{0}', space=vmem, size = 0x8000, scoped, tag = 'input window, operand 1, single buffered']
    #allocation4 [shape = 's32[1]{0}', space=sflag, size = 0x4, scoped, tag = 'scoped memory for tpu_custom_call.1']
    #allocation5 [shape = 's32[1]{0}', space=sflag, size = 0x4, scoped, tag = 'scoped memory for tpu_custom_call.1']
    #allocation6 [shape = 'u8[16384]{0}', space=vmem, size = 0x4000, scoped, tag = 'input window, operand 2, single buffered']
    #allocation7 [shape = 's32[1]{0}', space=sflag, size = 0x4, scoped, tag = 'scoped memory for tpu_custom_call.1']
    #allocation8 [shape = 'u8[32768]{0}', space=vmem, size = 0x8000, scoped, tag = 'output window, operand 0, single buffered']
    %9 = vsyncpa [#allocation4], 0
    %10 = vsyncpa [#allocation7], 0
    %11 = vsyncpa [#allocation5], 0
    // Predicated region
    $region2: #{tpu_custom_call.1} parent=1 // pred_check
      _
    $region3: #{tpu_custom_call.1} parent=1 // pred_check_branch
      %13 = sbr.rel (0) target = $region5
    $region4: #{tpu_custom_call.1} parent=1 // pred_region
      _
    $region5: #{tpu_custom_call.1} parent=1 // pred_fallthru
      _
    // Predicated region
    $region6: #{tpu_custom_call.1} parent=1 // pred_check
      _
    $region7: #{tpu_custom_call.1} parent=1 // pred_check_branch
      %15 = sbr.rel (0) target = $region9
    $region8: #{tpu_custom_call.1} parent=1 // pred_region
      %s17 = ssub.s32 1024, 1024
      %18 = vsyncadd [#allocation4], %s17
      %s20 = sshll.u32 [#allocation3], 4
      %s21 = int_to_ptr.vmem [resolvable:$true] %s20
      %23 = dma.hbm_to_vmem [thread:$0]  %s1, 1024, %s21, [#allocation4]
    $region9: #{tpu_custom_call.1} parent=1 // pred_fallthru
      _
    // Predicated region
    $region10: #{tpu_custom_call.1} parent=1 // pred_check
      _
    $region11: #{tpu_custom_call.1} parent=1 // pred_check_branch
      %25 = sbr.rel (0) target = $region13
    $region12: #{tpu_custom_call.1} parent=1 // pred_region
      %s27 = ssub.s32 512, 512
      %28 = vsyncadd [#allocation7], %s27
      %s30 = sshll.u32 [#allocation6], 4
      %s31 = int_to_ptr.vmem [resolvable:$true] %s30
      %33 = dma.hbm_to_vmem [thread:$0]  %s2, 512, %s31, [#allocation7]
    $region13: #{tpu_custom_call.1} parent=1 // pred_fallthru
      _
    // Predicated region
    $region14: #{tpu_custom_call.1} parent=1 // pred_check
      _
    $region15: #{tpu_custom_call.1} parent=1 // pred_check_branch
      %35 = sbr.rel (0) target = $region17
    $region16: #{tpu_custom_call.1} parent=1 // pred_region
      %36 = dma.done [#allocation4], 1024
    $region17: #{tpu_custom_call.1} parent=1 // pred_fallthru
      _
    // Predicated region
    $region18: #{tpu_custom_call.1} parent=1 // pred_check
      _
    $region19: #{tpu_custom_call.1} parent=1 // pred_check_branch
      %38 = sbr.rel (0) target = $region21
    $region20: #{tpu_custom_call.1} parent=1 // pred_region
      %39 = dma.done [#allocation7], 512
    $region21: #{tpu_custom_call.1} parent=1 // pred_fallthru
      _
    %v40 = vld [vmem:[#allocation3] sm:$0xff]
    %v41 = vld [vmem:[#allocation3 + $0x8] sm:$0xff]
    %v42 = vld [vmem:[#allocation3 + $0x10] sm:$0xff]
    %v43 = vld [vmem:[#allocation3 + $0x18] sm:$0xff]
    %v44 = vld [vmem:[#allocation3 + $0x20] sm:$0xff]
    %v45 = vld [vmem:[#allocation3 + $0x28] sm:$0xff]
    %v46 = vld [vmem:[#allocation3 + $0x30] sm:$0xff]
    %v47 = vld [vmem:[#allocation3 + $0x38] sm:$0xff]
    %v48 = vld [vmem:[#allocation6] sm:$0xff]
    %v49 = vld [vmem:[#allocation6 + $0x8] sm:$0xff]
    %v50 = vld [vmem:[#allocation6 + $0x10] sm:$0xff]
    %v51 = vld [vmem:[#allocation6 + $0x18] sm:$0xff]
    %v52 = vmul.f32 %v40, %v40
    %v53 = vmul.f32 %v41, %v41
    %v54 = vmul.f32 %v42, %v42
    %v55 = vmul.f32 %v43, %v43
    %v56 = vmul.f32 %v44, %v44
    %v57 = vmul.f32 %v45, %v45
    %v58 = vmul.f32 %v46, %v46
    %v59 = vmul.f32 %v47, %v47
    %v68 = vcombine.high %v52, %v52
    %v70 = vunpack.c.l.s4 1983009808
    %v71 = vunpack.c.0.s8 %v70
    %v72 = vlaneseq
    %v73 = vshrl.u32 %v72, 7
    %v74 = vsub.s32 %v71, %v73
    %v75 = vrot.slane %v52, %v74
    %v77 = vunpack.c.l.s4 1983009808
    %v78 = vunpack.c.0.s8 %v77
    %v79 = vlaneseq
    %v80 = vshrl.u32 %v79, 7
    %v81 = vsub.s32 %v78, %v80
    %v82 = vrot.slane %v68, %v81
    %v83 = vcombine.high %v75, %v75
    %v84 = vcombine.high %v82, %v82
    %v85 = vcombine.high %v53, %v53
    %v87 = vunpack.c.l.s4 1983009808
    %v88 = vunpack.c.0.s8 %v87
    %v89 = vlaneseq
    %v90 = vshrl.u32 %v89, 7
    %v91 = vsub.s32 %v88, %v90
    %v92 = vrot.slane %v53, %v91
    %v94 = vunpack.c.l.s4 1983009808
    %v95 = vunpack.c.0.s8 %v94
    %v96 = vlaneseq
    %v97 = vshrl.u32 %v96, 7
    %v98 = vsub.s32 %v95, %v97
    %v99 = vrot.slane %v85, %v98
    %v100 = vcombine.high %v92, %v92
    %v101 = vcombine.high %v99, %v99
    %v102 = vcombine.high %v54, %v54
    %v104 = vunpack.c.l.s4 1983009808
    %v105 = vunpack.c.0.s8 %v104
    %v106 = vlaneseq
    %v107 = vshrl.u32 %v106, 7
    %v108 = vsub.s32 %v105, %v107
    %v109 = vrot.slane %v54, %v108
    %v111 = vunpack.c.l.s4 1983009808
    %v112 = vunpack.c.0.s8 %v111
    %v113 = vlaneseq
    %v114 = vshrl.u32 %v113, 7
    %v115 = vsub.s32 %v112, %v114
    %v116 = vrot.slane %v102, %v115
    %v117 = vcombine.high %v109, %v109
    %v118 = vcombine.high %v116, %v116
    %v119 = vcombine.high %v55, %v55
    %v121 = vunpack.c.l.s4 1983009808
    %v122 = vunpack.c.0.s8 %v121
    %v123 = vlaneseq
    %v124 = vshrl.u32 %v123, 7
    %v125 = vsub.s32 %v122, %v124
    %v126 = vrot.slane %v55, %v125
    %v128 = vunpack.c.l.s4 1983009808
    %v129 = vunpack.c.0.s8 %v128
    %v130 = vlaneseq
    %v131 = vshrl.u32 %v130, 7
    %v132 = vsub.s32 %v129, %v131
    %v133 = vrot.slane %v119, %v132
    %v134 = vcombine.high %v126, %v126
    %v135 = vcombine.high %v133, %v133
    %v136 = vcombine.high %v56, %v56
    %v138 = vunpack.c.l.s4 1983009808
    %v139 = vunpack.c.0.s8 %v138
    %v140 = vlaneseq
    %v141 = vshrl.u32 %v140, 7
    %v142 = vsub.s32 %v139, %v141
    %v143 = vrot.slane %v56, %v142
    %v145 = vunpack.c.l.s4 1983009808
    %v146 = vunpack.c.0.s8 %v145
    %v147 = vlaneseq
    %v148 = vshrl.u32 %v147, 7
    %v149 = vsub.s32 %v146, %v148
    %v150 = vrot.slane %v136, %v149
    %v151 = vcombine.high %v143, %v143
    %v152 = vcombine.high %v150, %v150
    %v153 = vcombine.high %v57, %v57
    %v155 = vunpack.c.l.s4 1983009808
    %v156 = vunpack.c.0.s8 %v155
    %v157 = vlaneseq
    %v158 = vshrl.u32 %v157, 7
    %v159 = vsub.s32 %v156, %v158
    %v160 = vrot.slane %v57, %v159
    %v162 = vunpack.c.l.s4 1983009808
    %v163 = vunpack.c.0.s8 %v162
    %v164 = vlaneseq
    %v165 = vshrl.u32 %v164, 7
    %v166 = vsub.s32 %v163, %v165
    %v167 = vrot.slane %v153, %v166
    %v168 = vcombine.high %v160, %v160
    %v169 = vcombine.high %v167, %v167
    %v170 = vcombine.high %v58, %v58
    %v172 = vunpack.c.l.s4 1983009808
    %v173 = vunpack.c.0.s8 %v172
    %v174 = vlaneseq
    %v175 = vshrl.u32 %v174, 7
    %v176 = vsub.s32 %v173, %v175
    %v177 = vrot.slane %v58, %v176
    %v179 = vunpack.c.l.s4 1983009808
    %v180 = vunpack.c.0.s8 %v179
    %v181 = vlaneseq
    %v182 = vshrl.u32 %v181, 7
    %v183 = vsub.s32 %v180, %v182
    %v184 = vrot.slane %v170, %v183
    %v185 = vcombine.high %v177, %v177
    %v186 = vcombine.high %v184, %v184
    %v187 = vcombine.high %v59, %v59
    %v189 = vunpack.c.l.s4 1983009808
    %v190 = vunpack.c.0.s8 %v189
    %v191 = vlaneseq
    %v192 = vshrl.u32 %v191, 7
    %v193 = vsub.s32 %v190, %v192
    %v194 = vrot.slane %v59, %v193
    %v196 = vunpack.c.l.s4 1983009808
    %v197 = vunpack.c.0.s8 %v196
    %v198 = vlaneseq
    %v199 = vshrl.u32 %v198, 7
    %v200 = vsub.s32 %v197, %v199
    %v201 = vrot.slane %v187, %v200
    %v202 = vcombine.high %v194, %v194
    %v203 = vcombine.high %v201, %v201
    %vm236 = vcmask 1041408
    %v237 = vsel %vm236, %v75, 0.0
    %v238 = vsel %vm236, %v83, 0.0
    %v239 = vadd.f32 %v237, %v238
    %v240 = vsel %vm236, %v82, 0.0
    %v241 = vadd.f32 %v239, %v240
    %v242 = vsel %vm236, %v84, 0.0
    %v243 = vadd.f32 %v241, %v242
    %v244 = vsel %vm236, %v92, 0.0
    %v245 = vadd.f32 %v243, %v244
    %v246 = vsel %vm236, %v100, 0.0
    %v247 = vadd.f32 %v245, %v246
    %v248 = vsel %vm236, %v99, 0.0
    %v249 = vadd.f32 %v247, %v248
    %v250 = vsel %vm236, %v101, 0.0
    %v251 = vadd.f32 %v249, %v250
    %v252 = vsel %vm236, %v109, 0.0
    %v253 = vadd.f32 %v251, %v252
    %v254 = vsel %vm236, %v117, 0.0
    %v255 = vadd.f32 %v253, %v254
    %v256 = vsel %vm236, %v116, 0.0
    %v257 = vadd.f32 %v255, %v256
    %v258 = vsel %vm236, %v118, 0.0
    %v259 = vadd.f32 %v257, %v258
    %v260 = vsel %vm236, %v126, 0.0
    %v261 = vadd.f32 %v259, %v260
    %v262 = vsel %vm236, %v134, 0.0
    %v263 = vadd.f32 %v261, %v262
    %v264 = vsel %vm236, %v133, 0.0
    %v265 = vadd.f32 %v263, %v264
    %v266 = vsel %vm236, %v135, 0.0
    %v267 = vadd.f32 %v265, %v266
    %v268 = vsel %vm236, %v143, 0.0
    %v269 = vadd.f32 %v267, %v268
    %v270 = vsel %vm236, %v151, 0.0
    %v271 = vadd.f32 %v269, %v270
    %v272 = vsel %vm236, %v150, 0.0
    %v273 = vadd.f32 %v271, %v272
    %v274 = vsel %vm236, %v152, 0.0
    %v275 = vadd.f32 %v273, %v274
    %v276 = vsel %vm236, %v160, 0.0
    %v277 = vadd.f32 %v275, %v276
    %v278 = vsel %vm236, %v168, 0.0
    %v279 = vadd.f32 %v277, %v278
    %v280 = vsel %vm236, %v167, 0.0
    %v281 = vadd.f32 %v279, %v280
    %v282 = vsel %vm236, %v169, 0.0
    %v283 = vadd.f32 %v281, %v282
    %v284 = vsel %vm236, %v177, 0.0
    %v285 = vadd.f32 %v283, %v284
    %v286 = vsel %vm236, %v185, 0.0
    %v287 = vadd.f32 %v285, %v286
    %v288 = vsel %vm236, %v184, 0.0
    %v289 = vadd.f32 %v287, %v288
    %v290 = vsel %vm236, %v186, 0.0
    %v291 = vadd.f32 %v289, %v290
    %v292 = vsel %vm236, %v194, 0.0
    %v293 = vadd.f32 %v291, %v292
    %v294 = vsel %vm236, %v202, 0.0
    %v295 = vadd.f32 %v293, %v294
    %v296 = vsel %vm236, %v201, 0.0
    %v297 = vadd.f32 %v295, %v296
    %v298 = vsel %vm236, %v203, 0.0
    %v299 = vadd.f32 %v297, %v298
    %300 = vadd.xlane.f32.xlu0 %v299
    %v301 = vpop.xlane.xlu0 %300
    %v302 = vrot.slane %v301, 4
    %v303 = vadd.f32 %v301, %v302
    %v304 = vrot.slane %v303, 2
    %v305 = vadd.f32 %v303, %v304
    %v306 = vrot.slane %v305, 1
    %v307 = vadd.f32 %v305, %v306
    %s308 = vtos %v307
    %v309 = vstv %s308
    %v310 = vmul.f32 %v48, %v48
    %v311 = vmul.f32 %v49, %v49
    %v312 = vmul.f32 %v50, %v50
    %v313 = vmul.f32 %v51, %v51
    %v318 = vlaneseq
    %v319 = vshrl.u32 %v318, 7
    %v320 = vsub.s32 0, %v319
    %v321 = vrot.slane %v310, %v320
    %v322 = vlaneseq
    %v323 = vshrl.u32 %v322, 7
    %v324 = vsub.s32 1, %v323
    %v325 = vrot.slane %v310, %v324
    %v326 = vlaneseq
    %v327 = vshrl.u32 %v326, 7
    %v328 = vsub.s32 2, %v327
    %v329 = vrot.slane %v310, %v328
    %v330 = vlaneseq
    %v331 = vshrl.u32 %v330, 7
    %v332 = vsub.s32 3, %v331
    %v333 = vrot.slane %v310, %v332
    %v334 = vlaneseq
    %v335 = vshrl.u32 %v334, 7
    %v336 = vsub.s32 4, %v335
    %v337 = vrot.slane %v310, %v336
    %v338 = vlaneseq
    %v339 = vshrl.u32 %v338, 7
    %v340 = vsub.s32 5, %v339
    %v341 = vrot.slane %v310, %v340
    %v342 = vlaneseq
    %v343 = vshrl.u32 %v342, 7
    %v344 = vsub.s32 6, %v343
    %v345 = vrot.slane %v310, %v344
    %v346 = vlaneseq
    %v347 = vshrl.u32 %v346, 7
    %v348 = vsub.s32 7, %v347
    %v349 = vrot.slane %v310, %v348
    %v350 = vlaneseq
    %v351 = vshrl.u32 %v350, 7
    %v352 = vsub.s32 0, %v351
    %v353 = vrot.slane %v311, %v352
    %v354 = vlaneseq
    %v355 = vshrl.u32 %v354, 7
    %v356 = vsub.s32 1, %v355
    %v357 = vrot.slane %v311, %v356
    %v358 = vlaneseq
    %v359 = vshrl.u32 %v358, 7
    %v360 = vsub.s32 2, %v359
    %v361 = vrot.slane %v311, %v360
    %v362 = vlaneseq
    %v363 = vshrl.u32 %v362, 7
    %v364 = vsub.s32 3, %v363
    %v365 = vrot.slane %v311, %v364
    %v366 = vlaneseq
    %v367 = vshrl.u32 %v366, 7
    %v368 = vsub.s32 4, %v367
    %v369 = vrot.slane %v311, %v368
    %v370 = vlaneseq
    %v371 = vshrl.u32 %v370, 7
    %v372 = vsub.s32 5, %v371
    %v373 = vrot.slane %v311, %v372
    %v374 = vlaneseq
    %v375 = vshrl.u32 %v374, 7
    %v376 = vsub.s32 6, %v375
    %v377 = vrot.slane %v311, %v376
    %v378 = vlaneseq
    %v379 = vshrl.u32 %v378, 7
    %v380 = vsub.s32 7, %v379
    %v381 = vrot.slane %v311, %v380
    %v382 = vlaneseq
    %v383 = vshrl.u32 %v382, 7
    %v384 = vsub.s32 0, %v383
    %v385 = vrot.slane %v312, %v384
    %v386 = vlaneseq
    %v387 = vshrl.u32 %v386, 7
    %v388 = vsub.s32 1, %v387
    %v389 = vrot.slane %v312, %v388
    %v390 = vlaneseq
    %v391 = vshrl.u32 %v390, 7
    %v392 = vsub.s32 2, %v391
    %v393 = vrot.slane %v312, %v392
    %v394 = vlaneseq
    %v395 = vshrl.u32 %v394, 7
    %v396 = vsub.s32 3, %v395
    %v397 = vrot.slane %v312, %v396
    %v398 = vlaneseq
    %v399 = vshrl.u32 %v398, 7
    %v400 = vsub.s32 4, %v399
    %v401 = vrot.slane %v312, %v400
    %v402 = vlaneseq
    %v403 = vshrl.u32 %v402, 7
    %v404 = vsub.s32 5, %v403
    %v405 = vrot.slane %v312, %v404
    %v406 = vlaneseq
    %v407 = vshrl.u32 %v406, 7
    %v408 = vsub.s32 6, %v407
    %v409 = vrot.slane %v312, %v408
    %v410 = vlaneseq
    %v411 = vshrl.u32 %v410, 7
    %v412 = vsub.s32 7, %v411
    %v413 = vrot.slane %v312, %v412
    %v414 = vlaneseq
    %v415 = vshrl.u32 %v414, 7
    %v416 = vsub.s32 0, %v415
    %v417 = vrot.slane %v313, %v416
    %v418 = vlaneseq
    %v419 = vshrl.u32 %v418, 7
    %v420 = vsub.s32 1, %v419
    %v421 = vrot.slane %v313, %v420
    %v422 = vlaneseq
    %v423 = vshrl.u32 %v422, 7
    %v424 = vsub.s32 2, %v423
    %v425 = vrot.slane %v313, %v424
    %v426 = vlaneseq
    %v427 = vshrl.u32 %v426, 7
    %v428 = vsub.s32 3, %v427
    %v429 = vrot.slane %v313, %v428
    %v430 = vlaneseq
    %v431 = vshrl.u32 %v430, 7
    %v432 = vsub.s32 4, %v431
    %v433 = vrot.slane %v313, %v432
    %v434 = vlaneseq
    %v435 = vshrl.u32 %v434, 7
    %v436 = vsub.s32 5, %v435
    %v437 = vrot.slane %v313, %v436
    %v438 = vlaneseq
    %v439 = vshrl.u32 %v438, 7
    %v440 = vsub.s32 6, %v439
    %v441 = vrot.slane %v313, %v440
    %v442 = vlaneseq
    %v443 = vshrl.u32 %v442, 7
    %v444 = vsub.s32 7, %v443
    %v445 = vrot.slane %v313, %v444
    %vm478 = vcmask 1040384
    %v479 = vsel %vm478, %v321, 0.0
    %v480 = vsel %vm478, %v325, 0.0
    %v481 = vadd.f32 %v479, %v480
    %v482 = vsel %vm478, %v329, 0.0
    %v483 = vadd.f32 %v481, %v482
    %v484 = vsel %vm478, %v333, 0.0
    %v485 = vadd.f32 %v483, %v484
    %v486 = vsel %vm478, %v337, 0.0
    %v487 = vadd.f32 %v485, %v486
    %v488 = vsel %vm478, %v341, 0.0
    %v489 = vadd.f32 %v487, %v488
    %v490 = vsel %vm478, %v345, 0.0
    %v491 = vadd.f32 %v489, %v490
    %v492 = vsel %vm478, %v349, 0.0
    %v493 = vadd.f32 %v491, %v492
    %v494 = vsel %vm478, %v353, 0.0
    %v495 = vadd.f32 %v493, %v494
    %v496 = vsel %vm478, %v357, 0.0
    %v497 = vadd.f32 %v495, %v496
    %v498 = vsel %vm478, %v361, 0.0
    %v499 = vadd.f32 %v497, %v498
    %v500 = vsel %vm478, %v365, 0.0
    %v501 = vadd.f32 %v499, %v500
    %v502 = vsel %vm478, %v369, 0.0
    %v503 = vadd.f32 %v501, %v502
    %v504 = vsel %vm478, %v373, 0.0
    %v505 = vadd.f32 %v503, %v504
    %v506 = vsel %vm478, %v377, 0.0
    %v507 = vadd.f32 %v505, %v506
    %v508 = vsel %vm478, %v381, 0.0
    %v509 = vadd.f32 %v507, %v508
    %v510 = vsel %vm478, %v385, 0.0
    %v511 = vadd.f32 %v509, %v510
    %v512 = vsel %vm478, %v389, 0.0
    %v513 = vadd.f32 %v511, %v512
    %v514 = vsel %vm478, %v393, 0.0
    %v515 = vadd.f32 %v513, %v514
    %v516 = vsel %vm478, %v397, 0.0
    %v517 = vadd.f32 %v515, %v516
    %v518 = vsel %vm478, %v401, 0.0
    %v519 = vadd.f32 %v517, %v518
    %v520 = vsel %vm478, %v405, 0.0
    %v521 = vadd.f32 %v519, %v520
    %v522 = vsel %vm478, %v409, 0.0
    %v523 = vadd.f32 %v521, %v522
    %v524 = vsel %vm478, %v413, 0.0
    %v525 = vadd.f32 %v523, %v524
    %v526 = vsel %vm478, %v417, 0.0
    %v527 = vadd.f32 %v525, %v526
    %v528 = vsel %vm478, %v421, 0.0
    %v529 = vadd.f32 %v527, %v528
    %v530 = vsel %vm478, %v425, 0.0
    %v531 = vadd.f32 %v529, %v530
    %v532 = vsel %vm478, %v429, 0.0
    %v533 = vadd.f32 %v531, %v532
    %v534 = vsel %vm478, %v433, 0.0
    %v535 = vadd.f32 %v533, %v534
    %v536 = vsel %vm478, %v437, 0.0
    %v537 = vadd.f32 %v535, %v536
    %v538 = vsel %vm478, %v441, 0.0
    %v539 = vadd.f32 %v537, %v538
    %v540 = vsel %vm478, %v445, 0.0
    %v541 = vadd.f32 %v539, %v540
    %542 = vadd.xlane.f32.xlu0 %v541
    %v543 = vpop.xlane.xlu0 %542
    %v544 = vrot.slane %v543, 4
    %v545 = vadd.f32 %v543, %v544
    %v546 = vrot.slane %v545, 2
    %v547 = vadd.f32 %v545, %v546
    %v548 = vrot.slane %v547, 1
    %v549 = vadd.f32 %v547, %v548
    %s550 = vtos %v549
    %v551 = vstv %s550
    %s552 = sld [smem:[#allocation2]]
    %v553 = vrcp.pop %v309
    %v554 = vmul.f32 %v551, %v553
    %v555 = vrsqrt.pop %v554
    %v556 = vmul.f32 %v554, %v555
    %vm557 = vcmp.eq.f32.partialorder %v554, inf
    %v558 = vsel %vm557, %v554, %v556
    %vm559 = vcmp.eq.f32.partialorder %v554, 0.0
    %v560 = vand.u32 %v554, 2147483648
    %v561 = vsel %vm559, %v560, %v558
    %v562 = vstv %s552
    %v563 = vmul.f32 %v562, %v561
    %v564 = vmul.f32 %v563, %v40
    %v565 = vmul.f32 %v563, %v41
    %v566 = vmul.f32 %v563, %v42
    %v567 = vmul.f32 %v563, %v43
    %v568 = vmul.f32 %v563, %v44
    %v569 = vmul.f32 %v563, %v45
    %v570 = vmul.f32 %v563, %v46
    %v571 = vmul.f32 %v563, %v47
    %v576 = vlaneseq
    %v577 = vshrl.u32 %v576, 7
    %v578 = vsub.s32 0, %v577
    %v579 = vrot.slane %v48, %v578
    %v580 = vlaneseq
    %v581 = vshrl.u32 %v580, 7
    %v582 = vsub.s32 1, %v581
    %v583 = vrot.slane %v48, %v582
    %v584 = vlaneseq
    %v585 = vshrl.u32 %v584, 7
    %v586 = vsub.s32 2, %v585
    %v587 = vrot.slane %v48, %v586
    %v588 = vlaneseq
    %v589 = vshrl.u32 %v588, 7
    %v590 = vsub.s32 3, %v589
    %v591 = vrot.slane %v48, %v590
    %v592 = vlaneseq
    %v593 = vshrl.u32 %v592, 7
    %v594 = vsub.s32 4, %v593
    %v595 = vrot.slane %v48, %v594
    %v596 = vlaneseq
    %v597 = vshrl.u32 %v596, 7
    %v598 = vsub.s32 5, %v597
    %v599 = vrot.slane %v48, %v598
    %v600 = vlaneseq
    %v601 = vshrl.u32 %v600, 7
    %v602 = vsub.s32 6, %v601
    %v603 = vrot.slane %v48, %v602
    %v604 = vlaneseq
    %v605 = vshrl.u32 %v604, 7
    %v606 = vsub.s32 7, %v605
    %v607 = vrot.slane %v48, %v606
    %v608 = vlaneseq
    %v609 = vshrl.u32 %v608, 7
    %v610 = vsub.s32 0, %v609
    %v611 = vrot.slane %v49, %v610
    %v612 = vlaneseq
    %v613 = vshrl.u32 %v612, 7
    %v614 = vsub.s32 1, %v613
    %v615 = vrot.slane %v49, %v614
    %v616 = vlaneseq
    %v617 = vshrl.u32 %v616, 7
    %v618 = vsub.s32 2, %v617
    %v619 = vrot.slane %v49, %v618
    %v620 = vlaneseq
    %v621 = vshrl.u32 %v620, 7
    %v622 = vsub.s32 3, %v621
    %v623 = vrot.slane %v49, %v622
    %v624 = vlaneseq
    %v625 = vshrl.u32 %v624, 7
    %v626 = vsub.s32 4, %v625
    %v627 = vrot.slane %v49, %v626
    %v628 = vlaneseq
    %v629 = vshrl.u32 %v628, 7
    %v630 = vsub.s32 5, %v629
    %v631 = vrot.slane %v49, %v630
    %v632 = vlaneseq
    %v633 = vshrl.u32 %v632, 7
    %v634 = vsub.s32 6, %v633
    %v635 = vrot.slane %v49, %v634
    %v636 = vlaneseq
    %v637 = vshrl.u32 %v636, 7
    %v638 = vsub.s32 7, %v637
    %v639 = vrot.slane %v49, %v638
    %v640 = vlaneseq
    %v641 = vshrl.u32 %v640, 7
    %v642 = vsub.s32 0, %v641
    %v643 = vrot.slane %v50, %v642
    %v644 = vlaneseq
    %v645 = vshrl.u32 %v644, 7
    %v646 = vsub.s32 1, %v645
    %v647 = vrot.slane %v50, %v646
    %v648 = vlaneseq
    %v649 = vshrl.u32 %v648, 7
    %v650 = vsub.s32 2, %v649
    %v651 = vrot.slane %v50, %v650
    %v652 = vlaneseq
    %v653 = vshrl.u32 %v652, 7
    %v654 = vsub.s32 3, %v653
    %v655 = vrot.slane %v50, %v654
    %v656 = vlaneseq
    %v657 = vshrl.u32 %v656, 7
    %v658 = vsub.s32 4, %v657
    %v659 = vrot.slane %v50, %v658
    %v660 = vlaneseq
    %v661 = vshrl.u32 %v660, 7
    %v662 = vsub.s32 5, %v661
    %v663 = vrot.slane %v50, %v662
    %v664 = vlaneseq
    %v665 = vshrl.u32 %v664, 7
    %v666 = vsub.s32 6, %v665
    %v667 = vrot.slane %v50, %v666
    %v668 = vlaneseq
    %v669 = vshrl.u32 %v668, 7
    %v670 = vsub.s32 7, %v669
    %v671 = vrot.slane %v50, %v670
    %v672 = vlaneseq
    %v673 = vshrl.u32 %v672, 7
    %v674 = vsub.s32 0, %v673
    %v675 = vrot.slane %v51, %v674
    %v676 = vlaneseq
    %v677 = vshrl.u32 %v676, 7
    %v678 = vsub.s32 1, %v677
    %v679 = vrot.slane %v51, %v678
    %v680 = vlaneseq
    %v681 = vshrl.u32 %v680, 7
    %v682 = vsub.s32 2, %v681
    %v683 = vrot.slane %v51, %v682
    %v684 = vlaneseq
    %v685 = vshrl.u32 %v684, 7
    %v686 = vsub.s32 3, %v685
    %v687 = vrot.slane %v51, %v686
    %v688 = vlaneseq
    %v689 = vshrl.u32 %v688, 7
    %v690 = vsub.s32 4, %v689
    %v691 = vrot.slane %v51, %v690
    %v692 = vlaneseq
    %v693 = vshrl.u32 %v692, 7
    %v694 = vsub.s32 5, %v693
    %v695 = vrot.slane %v51, %v694
    %v696 = vlaneseq
    %v697 = vshrl.u32 %v696, 7
    %v698 = vsub.s32 6, %v697
    %v699 = vrot.slane %v51, %v698
    %v700 = vlaneseq
    %v701 = vshrl.u32 %v700, 7
    %v702 = vsub.s32 7, %v701
    %v703 = vrot.slane %v51, %v702
    %v704 = vcombine.low %v579, %v583
    %v705 = vcombine.low %v587, %v591
    %v707 = vunpack.c.l.s4 1983009808
    %v708 = vunpack.c.0.s8 %v707
    %v709 = vlaneseq
    %v710 = vshrl.u32 %v709, 7
    %v711 = vsub.s32 %v708, %v710
    %v712 = vrot.slane %v704, %v711
    %v714 = vunpack.c.l.s4 1983009808
    %v715 = vunpack.c.0.s8 %v714
    %v716 = vlaneseq
    %v717 = vshrl.u32 %v716, 7
    %v718 = vsub.s32 %v715, %v717
    %v719 = vrot.slane %v705, %v718
    %v720 = vcombine.low %v712, %v719
    %v721 = vcombine.low %v595, %v599
    %v722 = vcombine.low %v603, %v607
    %v724 = vunpack.c.l.s4 1983009808
    %v725 = vunpack.c.0.s8 %v724
    %v726 = vlaneseq
    %v727 = vshrl.u32 %v726, 7
    %v728 = vsub.s32 %v725, %v727
    %v729 = vrot.slane %v721, %v728
    %v731 = vunpack.c.l.s4 1983009808
    %v732 = vunpack.c.0.s8 %v731
    %v733 = vlaneseq
    %v734 = vshrl.u32 %v733, 7
    %v735 = vsub.s32 %v732, %v734
    %v736 = vrot.slane %v722, %v735
    %v737 = vcombine.low %v729, %v736
    %v738 = vcombine.low %v611, %v615
    %v739 = vcombine.low %v619, %v623
    %v741 = vunpack.c.l.s4 1983009808
    %v742 = vunpack.c.0.s8 %v741
    %v743 = vlaneseq
    %v744 = vshrl.u32 %v743, 7
    %v745 = vsub.s32 %v742, %v744
    %v746 = vrot.slane %v738, %v745
    %v748 = vunpack.c.l.s4 1983009808
    %v749 = vunpack.c.0.s8 %v748
    %v750 = vlaneseq
    %v751 = vshrl.u32 %v750, 7
    %v752 = vsub.s32 %v749, %v751
    %v753 = vrot.slane %v739, %v752
    %v754 = vcombine.low %v746, %v753
    %v755 = vcombine.low %v627, %v631
    %v756 = vcombine.low %v635, %v639
    %v758 = vunpack.c.l.s4 1983009808
    %v759 = vunpack.c.0.s8 %v758
    %v760 = vlaneseq
    %v761 = vshrl.u32 %v760, 7
    %v762 = vsub.s32 %v759, %v761
    %v763 = vrot.slane %v755, %v762
    %v765 = vunpack.c.l.s4 1983009808
    %v766 = vunpack.c.0.s8 %v765
    %v767 = vlaneseq
    %v768 = vshrl.u32 %v767, 7
    %v769 = vsub.s32 %v766, %v768
    %v770 = vrot.slane %v756, %v769
    %v771 = vcombine.low %v763, %v770
    %v772 = vcombine.low %v643, %v647
    %v773 = vcombine.low %v651, %v655
    %v775 = vunpack.c.l.s4 1983009808
    %v776 = vunpack.c.0.s8 %v775
    %v777 = vlaneseq
    %v778 = vshrl.u32 %v777, 7
    %v779 = vsub.s32 %v776, %v778
    %v780 = vrot.slane %v772, %v779
    %v782 = vunpack.c.l.s4 1983009808
    %v783 = vunpack.c.0.s8 %v782
    %v784 = vlaneseq
    %v785 = vshrl.u32 %v784, 7
    %v786 = vsub.s32 %v783, %v785
    %v787 = vrot.slane %v773, %v786
    %v788 = vcombine.low %v780, %v787
    %v789 = vcombine.low %v659, %v663
    %v790 = vcombine.low %v667, %v671
    %v792 = vunpack.c.l.s4 1983009808
    %v793 = vunpack.c.0.s8 %v792
    %v794 = vlaneseq
    %v795 = vshrl.u32 %v794, 7
    %v796 = vsub.s32 %v793, %v795
    %v797 = vrot.slane %v789, %v796
    %v799 = vunpack.c.l.s4 1983009808
    %v800 = vunpack.c.0.s8 %v799
    %v801 = vlaneseq
    %v802 = vshrl.u32 %v801, 7
    %v803 = vsub.s32 %v800, %v802
    %v804 = vrot.slane %v790, %v803
    %v805 = vcombine.low %v797, %v804
    %v806 = vcombine.low %v675, %v679
    %v807 = vcombine.low %v683, %v687
    %v809 = vunpack.c.l.s4 1983009808
    %v810 = vunpack.c.0.s8 %v809
    %v811 = vlaneseq
    %v812 = vshrl.u32 %v811, 7
    %v813 = vsub.s32 %v810, %v812
    %v814 = vrot.slane %v806, %v813
    %v816 = vunpack.c.l.s4 1983009808
    %v817 = vunpack.c.0.s8 %v816
    %v818 = vlaneseq
    %v819 = vshrl.u32 %v818, 7
    %v820 = vsub.s32 %v817, %v819
    %v821 = vrot.slane %v807, %v820
    %v822 = vcombine.low %v814, %v821
    %v823 = vcombine.low %v691, %v695
    %v824 = vcombine.low %v699, %v703
    %v826 = vunpack.c.l.s4 1983009808
    %v827 = vunpack.c.0.s8 %v826
    %v828 = vlaneseq
    %v829 = vshrl.u32 %v828, 7
    %v830 = vsub.s32 %v827, %v829
    %v831 = vrot.slane %v823, %v830
    %v833 = vunpack.c.l.s4 1983009808
    %v834 = vunpack.c.0.s8 %v833
    %v835 = vlaneseq
    %v836 = vshrl.u32 %v835, 7
    %v837 = vsub.s32 %v834, %v836
    %v838 = vrot.slane %v824, %v837
    %v839 = vcombine.low %v831, %v838
    %v848 = vadd.f32 %v564, %v720
    %v849 = vadd.f32 %v565, %v737
    %v850 = vadd.f32 %v566, %v754
    %v851 = vadd.f32 %v567, %v771
    %v852 = vadd.f32 %v568, %v788
    %v853 = vadd.f32 %v569, %v805
    %v854 = vadd.f32 %v570, %v822
    %v855 = vadd.f32 %v571, %v839
    %v856 = vmul.f32 %v848, 0.5
    %v857 = vmul.f32 %v849, 0.5
    %v858 = vmul.f32 %v850, 0.5
    %v859 = vmul.f32 %v851, 0.5
    %v860 = vmul.f32 %v852, 0.5
    %v861 = vmul.f32 %v853, 0.5
    %v862 = vmul.f32 %v854, 0.5
    %v863 = vmul.f32 %v855, 0.5
    %864 = vst [vmem:[#allocation8] sm:$0xff] %v856
    %865 = vst [vmem:[#allocation8 + $0x8] sm:$0xff] %v857
    %866 = vst [vmem:[#allocation8 + $0x10] sm:$0xff] %v858
    %867 = vst [vmem:[#allocation8 + $0x18] sm:$0xff] %v859
    %868 = vst [vmem:[#allocation8 + $0x20] sm:$0xff] %v860
    %869 = vst [vmem:[#allocation8 + $0x28] sm:$0xff] %v861
    %870 = vst [vmem:[#allocation8 + $0x30] sm:$0xff] %v862
    %871 = vst [vmem:[#allocation8 + $0x38] sm:$0xff] %v863
    // Predicated region
    $region22: #{tpu_custom_call.1} parent=1 // pred_check
      _
    $region23: #{tpu_custom_call.1} parent=1 // pred_check_branch
      %873 = sbr.rel (0) target = $region25
    $region24: #{tpu_custom_call.1} parent=1 // pred_region
      %s875 = ssub.s32 1024, 1024
      %876 = vsyncadd [#allocation5], %s875
      %s878 = sshll.u32 [#allocation8], 4
      %s879 = int_to_ptr.vmem [resolvable:$true] %s878
      %881 = dma.vmem_to_hbm [thread:$0]  %s879, 1024, %s3, [#allocation5]
    $region25: #{tpu_custom_call.1} parent=1 // pred_fallthru
      _
    // Predicated region
    $region26: #{tpu_custom_call.1} parent=1 // pred_check
      _
    $region27: #{tpu_custom_call.1} parent=1 // pred_check_branch
      %883 = sbr.rel (0) target = $region29
    $region28: #{tpu_custom_call.1} parent=1 // pred_region
      %884 = dma.done [#allocation5], 1024
    $region29: #{tpu_custom_call.1} parent=1 // pred_fallthru
      _
    %885 = vsyncpa [#allocation4], 1
    %886 = vsyncpa [#allocation7], 1
    %887 = vsyncpa [#allocation5], 1

</llo_original>
